<compile_context>
chip_gen: v6e
topology: v6e:2x2x1
jax: 0.10.0
libtpu: 0.0.40
codegen_flags: <defaults>
</compile_context>

<pallas_src>
import jax
import jax.numpy as jnp
from jax.experimental import pallas as pl
from jax.experimental.pallas import tpu as pltpu

HIDDEN = 256
OUT_PAD = 128          # lane-dense fc4 output width (single unmasked 128-lane store)
BN_EPS = 1e-5
DROP_P = 0.5           # F.dropout(x, p=0.5) defaults to training=True in PyTorch


def _hash32(x):
    # 2-round integer avalanche hash (xor-shift-multiply).  int32 multiply wraps;
    # (x >> 16) & 0xFFFF emulates a logical right shift with only jnp int ops, so it
    # lowers on Mosaic and in interpret mode.  High bits are the statistically strong ones.
    c = jnp.int32(0x045D9F3B)
    x = x ^ ((x >> 16) & jnp.int32(0xFFFF))
    x = x * c
    x = x ^ ((x >> 16) & jnp.int32(0xFFFF))
    x = x * c
    return x


def dnn_kernel(seed_ref, x_ref, w1_ref, w23_ref, w4_ref, vec_ref, out_ref):
    x = x_ref[...]
    batch = x.shape[0]
    seed = seed_ref[0]

    # One hash draw per (row, hidden) element, shared by all three dropout layers;
    # layer k keeps its element iff high bit (29 + k) is 0  (Bernoulli(0.5)).
    rows = jax.lax.broadcasted_iota(jnp.int32, (batch, HIDDEN), 0)
    cols = jax.lax.broadcasted_iota(jnp.int32, (batch, HIDDEN), 1)
    hb = _hash32(rows * jnp.int32(HIDDEN) + cols + seed * jnp.int32(100003)) >> 29
    # TODO(synk): once a large batch tile exists, derive each layer's keep mask right
    # before its jnp.where (and drop the int32 array) to keep the vreg live range short.

    def layer(h_in, w, base, bit):
        b    = vec_ref[base:base + 1, :]        # fc bias
        g_s  = vec_ref[base + 1:base + 2, :]    # BN gamma * 1/(1-p)  (folded at pack time)
        be_s = vec_ref[base + 2:base + 3, :]    # BN beta  * 1/(1-p)
        # fc -> relu   (bf16 MXU operands, f32 accumulation)
        h = jnp.dot(h_in.astype(jnp.bfloat16), w,
                    preferred_element_type=jnp.float32) + b
        h = jnp.maximum(h, 0.0)
        # train-mode BatchNorm1d: full-batch stats, biased variance; dropout scale is
        # pre-folded into g_s / be_s so dropout itself is a pure select.
        mean = jnp.mean(h, axis=0, keepdims=True)
        var = jnp.mean((h - mean) ** 2, axis=0, keepdims=True)
        h = (h - mean) * (jax.lax.rsqrt(var + BN_EPS) * g_s) + be_s
        keep = (hb & jnp.int32(bit)) == 0
        return jnp.where(keep, h, 0.0)

    h = layer(x, w1_ref[...], 0, 1)
    h = layer(h, w23_ref[0], 3, 2)
    h = layer(h, w23_ref[1], 6, 4)

    # fc4 (padded to OUT_PAD lanes) -> softmax over dim 1.  Padded weight columns are 0
    # and padded bias lanes are -1e30, so with max-subtraction they contribute exp == 0.
    b4 = vec_ref[9:10, 0:OUT_PAD]
    logits = jnp.dot(h.astype(jnp.bfloat16), w4_ref[...],
                     preferred_element_type=jnp.float32) + b4
    m = jnp.max(logits, axis=1, keepdims=True)
    e = jnp.exp(logits - m)
    s = jnp.sum(e, axis=1, keepdims=True)
    out_ref[...] = (e * pl.reciprocal(s, approx=True)).astype(out_ref.dtype)


def init_params(key, input_size, output_size):
    """PyTorch-default init: Linear W,b ~ U(-1/sqrt(fan_in), 1/sqrt(fan_in)); BN gamma=1,
    beta=0.  Weights are returned already transposed to (in, out), all f32."""
    dims = [(input_size, HIDDEN), (HIDDEN, HIDDEN), (HIDDEN, HIDDEN), (HIDDEN, output_size)]
    linear, bn = [], []
    for i, (fan_in, fan_out) in enumerate(dims):
        kw, kb, key = jax.random.split(key, 3)
        bound = 1.0 / (float(fan_in) ** 0.5)
        w = jax.random.uniform(kw, (fan_in, fan_out), jnp.float32, -bound, bound)
        b = jax.random.uniform(kb, (fan_out,), jnp.float32, -bound, bound)
        linear.append((w, b))
        if i < 3:
            bn.append((jnp.ones((fan_out,), jnp.float32), jnp.zeros((fan_out,), jnp.float32)))
    return linear, bn


def pack_params(linear, bn, output_size):
    """One-time prep (NOT in the per-call hot path): bf16 weight cast + w2/w3 stacking,
    fc4 lane padding, and folding the dropout scale 1/(1-p) into the BN affine."""
    (w1, b1), (w2, b2), (w3, b3), (w4, b4) = linear
    (g1, be1), (g2, be2), (g3, be3) = bn
    assert output_size <= OUT_PAD
    s = 1.0 / (1.0 - DROP_P)

    w1_bf = w1.astype(jnp.bfloat16)                                   # (in, 256)
    w23 = jnp.stack([w2, w3]).astype(jnp.bfloat16)                    # (2, 256, 256)
    w4p = jnp.pad(w4, ((0, 0), (0, OUT_PAD - output_size))).astype(jnp.bfloat16)  # (256, 128)
    b4row = jnp.pad(b4, (0, HIDDEN - output_size), constant_values=-1e30)          # (256,)

    vecs = jnp.stack([b1, g1 * s, be1 * s,
                      b2, g2 * s, be2 * s,
                      b3, g3 * s, be3 * s,
                      b4row]).astype(jnp.float32)                     # (10, 256)
    return (w1_bf, w23, w4p, vecs, output_size)


def dnn_forward(x, packed, seed=0):
    w1, w23, w4p, vecs, output_size = packed
    batch = x.shape[0]
    seed_arr = jnp.array([seed], dtype=jnp.int32)

    out = pl.pallas_call(
        dnn_kernel,
        out_shape=jax.ShapeDtypeStruct((batch, OUT_PAD), jnp.float32),
        in_specs=[pl.BlockSpec(memory_space=pltpu.MemorySpace.SMEM)]   # seed scalar
        + [pl.BlockSpec(memory_space=pltpu.MemorySpace.VMEM)] * 5,     # x, w1, w23, w4p, vecs
        out_specs=pl.BlockSpec(memory_space=pltpu.MemorySpace.VMEM),
    )(seed_arr, x, w1, w23, w4p, vecs)
    return out[:, :output_size]


if __name__ == "__main__":
    key = jax.random.PRNGKey(0)
    kx, kp = jax.random.split(key)

    batch = 8
    input_size = 16
    output_size = 4

    x = jax.random.normal(kx, (batch, input_size), dtype=jnp.float32)
    linear, bn = init_params(kp, input_size, output_size)
    packed = pack_params(linear, bn, output_size)      # one-time prep, outside hot path

    out = dnn_forward(x, packed, seed=0)
    out = jax.block_until_ready(out)

    assert out.shape == (batch, output_size)
    # softmax rows sum to ~1 (approx reciprocal => relaxed tolerance)
    assert bool(jnp.allclose(jnp.sum(out, axis=1), 1.0, atol=5e-3))
    assert bool(jnp.all(out >= 0.0))
    print("KERNEL_OK")
</pallas_src>

<mosaic_0001>
module attributes {stable_mosaic.version = 11 : i64} {
  func.func @dnn_kernel(%arg0: memref<1xi32, #tpu.memory_space<smem>>, %arg1: memref<8x16xf32, #tpu.memory_space<vmem>>, %arg2: memref<16x256xbf16, #tpu.memory_space<vmem>>, %arg3: memref<2x256x256xbf16, #tpu.memory_space<vmem>>, %arg4: memref<256x128xbf16, #tpu.memory_space<vmem>>, %arg5: memref<10x256xf32, #tpu.memory_space<vmem>>, %arg6: memref<8x128xf32, #tpu.memory_space<vmem>>) attributes {dimension_semantics = [], scalar_prefetch = 0 : i64, scratch_operands = 0 : i64, tpu.core_type = #tpu.core_type<tc>} {
    %c0 = arith.constant 0 : index
    %c0_0 = arith.constant 0 : index
    %0 = vector.load %arg1[%c0, %c0_0] : memref<8x16xf32, #tpu.memory_space<vmem>>, vector<8x16xf32>
    %c0_1 = arith.constant 0 : index
    %1 = memref.load %arg0[%c0_1] : memref<1xi32, #tpu.memory_space<smem>>
    %2 = tpu.iota {dimensions = array<i32: 0>} : vector<8x256xi32>
    %3 = tpu.iota {dimensions = array<i32: 1>} : vector<8x256xi32>
    %c256_i32 = arith.constant 256 : i32
    %4 = vector.broadcast %c256_i32 : i32 to vector<8x256xi32>
    %5 = arith.muli %2, %4 : vector<8x256xi32>
    %6 = arith.addi %5, %3 : vector<8x256xi32>
    %c100003_i32 = arith.constant 100003 : i32
    %7 = arith.muli %1, %c100003_i32 : i32
    %8 = vector.broadcast %7 : i32 to vector<8x256xi32>
    %9 = arith.addi %6, %8 : vector<8x256xi32>
    %c16_i32 = arith.constant 16 : i32
    %10 = vector.broadcast %c16_i32 : i32 to vector<8x256xi32>
    %11 = arith.shrsi %9, %10 : vector<8x256xi32>
    %c65535_i32 = arith.constant 65535 : i32
    %12 = vector.broadcast %c65535_i32 : i32 to vector<8x256xi32>
    %13 = arith.andi %11, %12 : vector<8x256xi32>
    %14 = arith.xori %9, %13 : vector<8x256xi32>
    %c73244475_i32 = arith.constant 73244475 : i32
    %15 = vector.broadcast %c73244475_i32 : i32 to vector<8x256xi32>
    %16 = arith.muli %14, %15 : vector<8x256xi32>
    %c16_i32_2 = arith.constant 16 : i32
    %17 = vector.broadcast %c16_i32_2 : i32 to vector<8x256xi32>
    %18 = arith.shrsi %16, %17 : vector<8x256xi32>
    %c65535_i32_3 = arith.constant 65535 : i32
    %19 = vector.broadcast %c65535_i32_3 : i32 to vector<8x256xi32>
    %20 = arith.andi %18, %19 : vector<8x256xi32>
    %21 = arith.xori %16, %20 : vector<8x256xi32>
    %c73244475_i32_4 = arith.constant 73244475 : i32
    %22 = vector.broadcast %c73244475_i32_4 : i32 to vector<8x256xi32>
    %23 = arith.muli %21, %22 : vector<8x256xi32>
    %c29_i32 = arith.constant 29 : i32
    %24 = vector.broadcast %c29_i32 : i32 to vector<8x256xi32>
    %25 = arith.shrsi %23, %24 : vector<8x256xi32>
    %c0_5 = arith.constant 0 : index
    %c0_6 = arith.constant 0 : index
    %26 = vector.load %arg2[%c0_5, %c0_6] : memref<16x256xbf16, #tpu.memory_space<vmem>>, vector<16x256xbf16>
    %c0_7 = arith.constant 0 : index
    %c0_8 = arith.constant 0 : index
    %27 = vector.load %arg5[%c0_7, %c0_8] : memref<10x256xf32, #tpu.memory_space<vmem>>, vector<1x256xf32>
    %c1 = arith.constant 1 : index
    %c0_9 = arith.constant 0 : index
    %28 = vector.load %arg5[%c1, %c0_9] : memref<10x256xf32, #tpu.memory_space<vmem>>, vector<1x256xf32>
    %c2 = arith.constant 2 : index
    %c0_10 = arith.constant 0 : index
    %29 = vector.load %arg5[%c2, %c0_10] : memref<10x256xf32, #tpu.memory_space<vmem>>, vector<1x256xf32>
    %30 = arith.truncf %0 : vector<8x16xf32> to vector<8x16xbf16>
    %cst = arith.constant dense<0.000000e+00> : vector<8x256xf32>
    %31 = tpu.matmul %30, %26, %cst {dimension_numbers = #tpu.dot_dimension_numbers<[1], [0], [0], [1], [0, 0, 1, 1], [], []>} : vector<8x16xbf16>, vector<16x256xbf16>, vector<8x256xf32> -> vector<8x256xf32>
    %32 = vector.broadcast %27 : vector<1x256xf32> to vector<8x256xf32>
    %33 = arith.addf %31, %32 : vector<8x256xf32>
    %cst_11 = arith.constant 0.000000e+00 : f32
    %34 = vector.broadcast %cst_11 : f32 to vector<8x256xf32>
    %35 = arith.maximumf %33, %34 : vector<8x256xf32>
    %cst_12 = arith.constant dense<0.000000e+00> : vector<256xf32>
    %36 = vector.multi_reduction <add>, %35, %cst_12 [0] : vector<8x256xf32> to vector<256xf32>
    %37 = vector.shape_cast %36 : vector<256xf32> to vector<1x256xf32>
    %cst_13 = arith.constant 8.000000e+00 : f32
    %38 = vector.broadcast %cst_13 : f32 to vector<1x256xf32>
    %39 = arith.divf %37, %38 : vector<1x256xf32>
    %40 = vector.broadcast %39 : vector<1x256xf32> to vector<8x256xf32>
    %41 = arith.subf %35, %40 : vector<8x256xf32>
    %42 = arith.mulf %41, %41 : vector<8x256xf32>
    %cst_14 = arith.constant dense<0.000000e+00> : vector<256xf32>
    %43 = vector.multi_reduction <add>, %42, %cst_14 [0] : vector<8x256xf32> to vector<256xf32>
    %44 = vector.shape_cast %43 : vector<256xf32> to vector<1x256xf32>
    %cst_15 = arith.constant 8.000000e+00 : f32
    %45 = vector.broadcast %cst_15 : f32 to vector<1x256xf32>
    %46 = arith.divf %44, %45 : vector<1x256xf32>
    %47 = vector.broadcast %39 : vector<1x256xf32> to vector<8x256xf32>
    %48 = arith.subf %35, %47 : vector<8x256xf32>
    %cst_16 = arith.constant 9.99999974E-6 : f32
    %49 = vector.broadcast %cst_16 : f32 to vector<1x256xf32>
    %50 = arith.addf %46, %49 : vector<1x256xf32>
    %51 = math.rsqrt %50 : vector<1x256xf32>
    %52 = arith.mulf %51, %28 : vector<1x256xf32>
    %53 = vector.broadcast %52 : vector<1x256xf32> to vector<8x256xf32>
    %54 = arith.mulf %48, %53 : vector<8x256xf32>
    %55 = vector.broadcast %29 : vector<1x256xf32> to vector<8x256xf32>
    %56 = arith.addf %54, %55 : vector<8x256xf32>
    %c1_i32 = arith.constant 1 : i32
    %57 = vector.broadcast %c1_i32 : i32 to vector<8x256xi32>
    %58 = arith.andi %25, %57 : vector<8x256xi32>
    %c0_i32 = arith.constant 0 : i32
    %59 = vector.broadcast %c0_i32 : i32 to vector<8x256xi32>
    %60 = arith.cmpi eq, %58, %59 : vector<8x256xi32>
    %cst_17 = arith.constant 0.000000e+00 : f32
    %61 = vector.broadcast %cst_17 : f32 to vector<8x256xf32>
    %62 = arith.select %60, %56, %61 : vector<8x256xi1>, vector<8x256xf32>
    %c0_18 = arith.constant 0 : index
    %c0_19 = arith.constant 0 : index
    %c0_20 = arith.constant 0 : index
    %63 = vector.load %arg3[%c0_18, %c0_19, %c0_20] : memref<2x256x256xbf16, #tpu.memory_space<vmem>>, vector<1x256x256xbf16>
    %64 = vector.shape_cast %63 : vector<1x256x256xbf16> to vector<256x256xbf16>
    %c3 = arith.constant 3 : index
    %c0_21 = arith.constant 0 : index
    %65 = vector.load %arg5[%c3, %c0_21] : memref<10x256xf32, #tpu.memory_space<vmem>>, vector<1x256xf32>
    %c4 = arith.constant 4 : index
    %c0_22 = arith.constant 0 : index
    %66 = vector.load %arg5[%c4, %c0_22] : memref<10x256xf32, #tpu.memory_space<vmem>>, vector<1x256xf32>
    %c5 = arith.constant 5 : index
    %c0_23 = arith.constant 0 : index
    %67 = vector.load %arg5[%c5, %c0_23] : memref<10x256xf32, #tpu.memory_space<vmem>>, vector<1x256xf32>
    %68 = arith.truncf %62 : vector<8x256xf32> to vector<8x256xbf16>
    %cst_24 = arith.constant dense<0.000000e+00> : vector<8x256xf32>
    %69 = tpu.matmul %68, %64, %cst_24 {dimension_numbers = #tpu.dot_dimension_numbers<[1], [0], [0], [1], [0, 0, 1, 1], [], []>} : vector<8x256xbf16>, vector<256x256xbf16>, vector<8x256xf32> -> vector<8x256xf32>
    %70 = vector.broadcast %65 : vector<1x256xf32> to vector<8x256xf32>
    %71 = arith.addf %69, %70 : vector<8x256xf32>
    %cst_25 = arith.constant 0.000000e+00 : f32
    %72 = vector.broadcast %cst_25 : f32 to vector<8x256xf32>
    %73 = arith.maximumf %71, %72 : vector<8x256xf32>
    %cst_26 = arith.constant dense<0.000000e+00> : vector<256xf32>
    %74 = vector.multi_reduction <add>, %73, %cst_26 [0] : vector<8x256xf32> to vector<256xf32>
    %75 = vector.shape_cast %74 : vector<256xf32> to vector<1x256xf32>
    %cst_27 = arith.constant 8.000000e+00 : f32
    %76 = vector.broadcast %cst_27 : f32 to vector<1x256xf32>
    %77 = arith.divf %75, %76 : vector<1x256xf32>
    %78 = vector.broadcast %77 : vector<1x256xf32> to vector<8x256xf32>
    %79 = arith.subf %73, %78 : vector<8x256xf32>
    %80 = arith.mulf %79, %79 : vector<8x256xf32>
    %cst_28 = arith.constant dense<0.000000e+00> : vector<256xf32>
    %81 = vector.multi_reduction <add>, %80, %cst_28 [0] : vector<8x256xf32> to vector<256xf32>
    %82 = vector.shape_cast %81 : vector<256xf32> to vector<1x256xf32>
    %cst_29 = arith.constant 8.000000e+00 : f32
    %83 = vector.broadcast %cst_29 : f32 to vector<1x256xf32>
    %84 = arith.divf %82, %83 : vector<1x256xf32>
    %85 = vector.broadcast %77 : vector<1x256xf32> to vector<8x256xf32>
    %86 = arith.subf %73, %85 : vector<8x256xf32>
    %cst_30 = arith.constant 9.99999974E-6 : f32
    %87 = vector.broadcast %cst_30 : f32 to vector<1x256xf32>
    %88 = arith.addf %84, %87 : vector<1x256xf32>
    %89 = math.rsqrt %88 : vector<1x256xf32>
    %90 = arith.mulf %89, %66 : vector<1x256xf32>
    %91 = vector.broadcast %90 : vector<1x256xf32> to vector<8x256xf32>
    %92 = arith.mulf %86, %91 : vector<8x256xf32>
    %93 = vector.broadcast %67 : vector<1x256xf32> to vector<8x256xf32>
    %94 = arith.addf %92, %93 : vector<8x256xf32>
    %c2_i32 = arith.constant 2 : i32
    %95 = vector.broadcast %c2_i32 : i32 to vector<8x256xi32>
    %96 = arith.andi %25, %95 : vector<8x256xi32>
    %c0_i32_31 = arith.constant 0 : i32
    %97 = vector.broadcast %c0_i32_31 : i32 to vector<8x256xi32>
    %98 = arith.cmpi eq, %96, %97 : vector<8x256xi32>
    %cst_32 = arith.constant 0.000000e+00 : f32
    %99 = vector.broadcast %cst_32 : f32 to vector<8x256xf32>
    %100 = arith.select %98, %94, %99 : vector<8x256xi1>, vector<8x256xf32>
    %c1_33 = arith.constant 1 : index
    %c0_34 = arith.constant 0 : index
    %c0_35 = arith.constant 0 : index
    %101 = vector.load %arg3[%c1_33, %c0_34, %c0_35] : memref<2x256x256xbf16, #tpu.memory_space<vmem>>, vector<1x256x256xbf16>
    %102 = vector.shape_cast %101 : vector<1x256x256xbf16> to vector<256x256xbf16>
    %c6 = arith.constant 6 : index
    %c0_36 = arith.constant 0 : index
    %103 = vector.load %arg5[%c6, %c0_36] : memref<10x256xf32, #tpu.memory_space<vmem>>, vector<1x256xf32>
    %c7 = arith.constant 7 : index
    %c0_37 = arith.constant 0 : index
    %104 = vector.load %arg5[%c7, %c0_37] : memref<10x256xf32, #tpu.memory_space<vmem>>, vector<1x256xf32>
    %c8 = arith.constant 8 : index
    %c0_38 = arith.constant 0 : index
    %105 = vector.load %arg5[%c8, %c0_38] : memref<10x256xf32, #tpu.memory_space<vmem>>, vector<1x256xf32>
    %106 = arith.truncf %100 : vector<8x256xf32> to vector<8x256xbf16>
    %cst_39 = arith.constant dense<0.000000e+00> : vector<8x256xf32>
    %107 = tpu.matmul %106, %102, %cst_39 {dimension_numbers = #tpu.dot_dimension_numbers<[1], [0], [0], [1], [0, 0, 1, 1], [], []>} : vector<8x256xbf16>, vector<256x256xbf16>, vector<8x256xf32> -> vector<8x256xf32>
    %108 = vector.broadcast %103 : vector<1x256xf32> to vector<8x256xf32>
    %109 = arith.addf %107, %108 : vector<8x256xf32>
    %cst_40 = arith.constant 0.000000e+00 : f32
    %110 = vector.broadcast %cst_40 : f32 to vector<8x256xf32>
    %111 = arith.maximumf %109, %110 : vector<8x256xf32>
    %cst_41 = arith.constant dense<0.000000e+00> : vector<256xf32>
    %112 = vector.multi_reduction <add>, %111, %cst_41 [0] : vector<8x256xf32> to vector<256xf32>
    %113 = vector.shape_cast %112 : vector<256xf32> to vector<1x256xf32>
    %cst_42 = arith.constant 8.000000e+00 : f32
    %114 = vector.broadcast %cst_42 : f32 to vector<1x256xf32>
    %115 = arith.divf %113, %114 : vector<1x256xf32>
    %116 = vector.broadcast %115 : vector<1x256xf32> to vector<8x256xf32>
    %117 = arith.subf %111, %116 : vector<8x256xf32>
    %118 = arith.mulf %117, %117 : vector<8x256xf32>
    %cst_43 = arith.constant dense<0.000000e+00> : vector<256xf32>
    %119 = vector.multi_reduction <add>, %118, %cst_43 [0] : vector<8x256xf32> to vector<256xf32>
    %120 = vector.shape_cast %119 : vector<256xf32> to vector<1x256xf32>
    %cst_44 = arith.constant 8.000000e+00 : f32
    %121 = vector.broadcast %cst_44 : f32 to vector<1x256xf32>
    %122 = arith.divf %120, %121 : vector<1x256xf32>
    %123 = vector.broadcast %115 : vector<1x256xf32> to vector<8x256xf32>
    %124 = arith.subf %111, %123 : vector<8x256xf32>
    %cst_45 = arith.constant 9.99999974E-6 : f32
    %125 = vector.broadcast %cst_45 : f32 to vector<1x256xf32>
    %126 = arith.addf %122, %125 : vector<1x256xf32>
    %127 = math.rsqrt %126 : vector<1x256xf32>
    %128 = arith.mulf %127, %104 : vector<1x256xf32>
    %129 = vector.broadcast %128 : vector<1x256xf32> to vector<8x256xf32>
    %130 = arith.mulf %124, %129 : vector<8x256xf32>
    %131 = vector.broadcast %105 : vector<1x256xf32> to vector<8x256xf32>
    %132 = arith.addf %130, %131 : vector<8x256xf32>
    %c4_i32 = arith.constant 4 : i32
    %133 = vector.broadcast %c4_i32 : i32 to vector<8x256xi32>
    %134 = arith.andi %25, %133 : vector<8x256xi32>
    %c0_i32_46 = arith.constant 0 : i32
    %135 = vector.broadcast %c0_i32_46 : i32 to vector<8x256xi32>
    %136 = arith.cmpi eq, %134, %135 : vector<8x256xi32>
    %cst_47 = arith.constant 0.000000e+00 : f32
    %137 = vector.broadcast %cst_47 : f32 to vector<8x256xf32>
    %138 = arith.select %136, %132, %137 : vector<8x256xi1>, vector<8x256xf32>
    %c9 = arith.constant 9 : index
    %c0_48 = arith.constant 0 : index
    %139 = vector.load %arg5[%c9, %c0_48] : memref<10x256xf32, #tpu.memory_space<vmem>>, vector<1x128xf32>
    %140 = arith.truncf %138 : vector<8x256xf32> to vector<8x256xbf16>
    %c0_49 = arith.constant 0 : index
    %c0_50 = arith.constant 0 : index
    %141 = vector.load %arg4[%c0_49, %c0_50] : memref<256x128xbf16, #tpu.memory_space<vmem>>, vector<256x128xbf16>
    %cst_51 = arith.constant dense<0.000000e+00> : vector<8x128xf32>
    %142 = tpu.matmul %140, %141, %cst_51 {dimension_numbers = #tpu.dot_dimension_numbers<[1], [0], [0], [1], [0, 0, 1, 1], [], []>} : vector<8x256xbf16>, vector<256x128xbf16>, vector<8x128xf32> -> vector<8x128xf32>
    %143 = vector.broadcast %139 : vector<1x128xf32> to vector<8x128xf32>
    %144 = arith.addf %142, %143 : vector<8x128xf32>
    %cst_52 = arith.constant dense<0xFF800000> : vector<8xf32>
    %145 = vector.multi_reduction <maximumf>, %144, %cst_52 [1] : vector<8x128xf32> to vector<8xf32>
    %146 = vector.shape_cast %145 : vector<8xf32> to vector<8x1xf32>
    %147 = vector.broadcast %146 : vector<8x1xf32> to vector<8x128xf32>
    %148 = arith.subf %144, %147 : vector<8x128xf32>
    %149 = math.exp %148 : vector<8x128xf32>
    %cst_53 = arith.constant dense<0.000000e+00> : vector<8xf32>
    %150 = vector.multi_reduction <add>, %149, %cst_53 [1] : vector<8x128xf32> to vector<8xf32>
    %151 = vector.shape_cast %150 : vector<8xf32> to vector<8x1xf32>
    %152 = tpu.reciprocal %151 {approx = true} : vector<8x1xf32> -> vector<8x1xf32>
    %153 = vector.broadcast %152 : vector<8x1xf32> to vector<8x128xf32>
    %154 = arith.mulf %149, %153 : vector<8x128xf32>
    %c0_54 = arith.constant 0 : index
    %c0_55 = arith.constant 0 : index
    %155 = vector.load %arg6[%c0_54, %c0_55] : memref<8x128xf32, #tpu.memory_space<vmem>>, vector<8x128xf32>
    tpu.vector_store %arg6[%c0_54, %c0_55], %154 {strides = array<i32>} : memref<8x128xf32, #tpu.memory_space<vmem>>, vector<8x128xf32>,
    return
  }
}

</mosaic_0001>

<llo_original>
// kernel: tpu_custom_call.1
$region0: #{tpu_custom_call.1}
  #allocation0 [shape = 'u32[]', space=smem, size = 0x4, offset = 0x4, fixed_abs, tag = 'smem constant byte address 0x4 - core index']
  #allocation1 [shape = 'u32[144,128]{1,0:T(1,128)}', space=vmem, size = 0x12000, scoped, tag = 'internal scratch']
  #allocation2 [shape = 's32[1]{0:T(128)S(6)}', space=smem, size = 0x200, scoped, tag = 'scoped memory for tpu_custom_call.1']
  %s0 = inlined_call_operand.<no memory space> [shape: s32[1], index: 0, kind: input, shape index: {}]
  %s1 = inlined_call_operand.hbm [shape: f32[8,16], index: 1, kind: input, shape index: {}]
  %s2 = inlined_call_operand.hbm [shape: bf16[16,256], index: 2, kind: input, shape index: {}]
  %s3 = inlined_call_operand.hbm [shape: bf16[2,256,256], index: 3, kind: input, shape index: {}]
  %s4 = inlined_call_operand.hbm [shape: bf16[256,128], index: 4, kind: input, shape index: {}]
  %s5 = inlined_call_operand.hbm [shape: f32[10,256], index: 5, kind: input, shape index: {}]
  %s6 = inlined_call_operand.hbm [shape: f32[8,128], index: 6, kind: output, shape index: {}]
  %s7 = sld [smem:[#allocation0]]
  $region54: #{tpu_custom_call.1} parent=0
    _
  %s9 = ssub.s32 1, %s7
  %s10 = scalar_select 0, %s9, %s7
  %11 = sst [smem:[#allocation2]] %s0
  $region1: #{tpu_custom_call.1} parent=0
    #allocation3 [shape = 'u8[4096]{0}', space=vmem, size = 0x1000, scoped, tag = 'input window, operand 1, single buffered']
    #allocation4 [shape = 's32[1]{0}', space=sflag, size = 0x4, scoped, tag = 'scoped memory for tpu_custom_call.1']
    #allocation5 [shape = 's32[1]{0}', space=sflag, size = 0x4, scoped, tag = 'scoped memory for tpu_custom_call.1']
    #allocation6 [shape = 'u8[8192]{0}', space=vmem, size = 0x2000, scoped, tag = 'input window, operand 2, single buffered']
    #allocation7 [shape = 's32[1]{0}', space=sflag, size = 0x4, scoped, tag = 'scoped memory for tpu_custom_call.1']
    #allocation8 [shape = 'u8[262144]{0}', space=vmem, size = 0x40000, scoped, tag = 'input window, operand 3, single buffered']
    #allocation9 [shape = 'u8[65536]{0}', space=vmem, size = 0x10000, scoped, tag = 'input window, operand 4, single buffered']
    #allocation10 [shape = 's32[1]{0}', space=sflag, size = 0x4, scoped, tag = 'scoped memory for tpu_custom_call.1']
    #allocation11 [shape = 'u8[16384]{0}', space=vmem, size = 0x4000, scoped, tag = 'input window, operand 5, single buffered']
    #allocation12 [shape = 'u8[4096]{0}', space=vmem, size = 0x1000, scoped, tag = 'output window, operand 0, single buffered']
    %12 = vsyncpa [#allocation4], 0
    %13 = vsyncpa [#allocation7], 0
    %14 = vsyncpa [#allocation10], 0
    %15 = vsyncpa [#allocation5], 0
    // Predicated region
    $region2: #{tpu_custom_call.1} parent=1 // pred_check
      _
    $region3: #{tpu_custom_call.1} parent=1 // pred_check_branch
      %17 = sbr.rel (0) target = $region5
    $region4: #{tpu_custom_call.1} parent=1 // pred_region
      _
    $region5: #{tpu_custom_call.1} parent=1 // pred_fallthru
      _
    // Predicated region
    $region6: #{tpu_custom_call.1} parent=1 // pred_check
      _
    $region7: #{tpu_custom_call.1} parent=1 // pred_check_branch
      %19 = sbr.rel (0) target = $region9
    $region8: #{tpu_custom_call.1} parent=1 // pred_region
      %s21 = ssub.s32 128, 128
      %22 = vsyncadd [#allocation4], %s21
      %s24 = sshll.u32 [#allocation3], 4
      %s25 = int_to_ptr.vmem [resolvable:$true] %s24
      %27 = dma.hbm_to_vmem [thread:$0]  %s1, 128, %s25, [#allocation4]
    $region9: #{tpu_custom_call.1} parent=1 // pred_fallthru
      _
    // Predicated region
    $region10: #{tpu_custom_call.1} parent=1 // pred_check
      _
    $region11: #{tpu_custom_call.1} parent=1 // pred_check_branch
      %29 = sbr.rel (0) target = $region13
    $region12: #{tpu_custom_call.1} parent=1 // pred_region
      %s31 = ssub.s32 256, 256
      %32 = vsyncadd [#allocation7], %s31
      %s33 = sshll.u32 [#allocation6], 4
      %s34 = int_to_ptr.vmem [resolvable:$true] %s33
      %39 = dma.hbm_to_vmem [thread:$0]  %s2, 256, %s34, [#allocation7], 128, 128, 8
    $region13: #{tpu_custom_call.1} parent=1 // pred_fallthru
      _
    // Predicated region
    $region14: #{tpu_custom_call.1} parent=1 // pred_check
      _
    $region15: #{tpu_custom_call.1} parent=1 // pred_check_branch
      %41 = sbr.rel (0) target = $region17
    $region16: #{tpu_custom_call.1} parent=1 // pred_region
      %s43 = ssub.s32 8192, 8192
      %44 = vsyncadd [#allocation7], %s43
      %s45 = sshll.u32 [#allocation8], 4
      %s46 = int_to_ptr.vmem [resolvable:$true] %s45
      %51 = dma.hbm_to_vmem [thread:$0]  %s3, 8192, %s46, [#allocation7], 128, 128, 8
    $region17: #{tpu_custom_call.1} parent=1 // pred_fallthru
      _
    // Predicated region
    $region18: #{tpu_custom_call.1} parent=1 // pred_check
      _
    $region19: #{tpu_custom_call.1} parent=1 // pred_check_branch
      %53 = sbr.rel (0) target = $region21
    $region20: #{tpu_custom_call.1} parent=1 // pred_region
      %s55 = ssub.s32 2048, 2048
      %56 = vsyncadd [#allocation10], %s55
      %s57 = sshll.u32 [#allocation9], 4
      %s58 = int_to_ptr.vmem [resolvable:$true] %s57
      %63 = dma.hbm_to_vmem [thread:$0]  %s4, 2048, %s58, [#allocation10], 64, 64, 4
    $region21: #{tpu_custom_call.1} parent=1 // pred_fallthru
      _
    // Predicated region
    $region22: #{tpu_custom_call.1} parent=1 // pred_check
      _
    $region23: #{tpu_custom_call.1} parent=1 // pred_check_branch
      %65 = sbr.rel (0) target = $region25
    $region24: #{tpu_custom_call.1} parent=1 // pred_region
      %s67 = ssub.s32 512, 512
      %68 = vsyncadd [#allocation10], %s67
      %s69 = sshll.u32 [#allocation11], 4
      %s70 = int_to_ptr.vmem [resolvable:$true] %s69
      %75 = dma.hbm_to_vmem [thread:$0]  %s5, 512, %s70, [#allocation10], 256, 256, 16
    $region25: #{tpu_custom_call.1} parent=1 // pred_fallthru
      _
    // Predicated region
    $region26: #{tpu_custom_call.1} parent=1 // pred_check
      _
    $region27: #{tpu_custom_call.1} parent=1 // pred_check_branch
      %77 = sbr.rel (0) target = $region29
    $region28: #{tpu_custom_call.1} parent=1 // pred_region
      %78 = dma.done [#allocation4], 128
    $region29: #{tpu_custom_call.1} parent=1 // pred_fallthru
      _
    // Predicated region
    $region30: #{tpu_custom_call.1} parent=1 // pred_check
      _
    $region31: #{tpu_custom_call.1} parent=1 // pred_check_branch
      %80 = sbr.rel (0) target = $region33
    $region32: #{tpu_custom_call.1} parent=1 // pred_region
      %81 = dma.done [#allocation7], 256
    $region33: #{tpu_custom_call.1} parent=1 // pred_fallthru
      _
    // Predicated region
    $region34: #{tpu_custom_call.1} parent=1 // pred_check
      _
    $region35: #{tpu_custom_call.1} parent=1 // pred_check_branch
      %83 = sbr.rel (0) target = $region37
    $region36: #{tpu_custom_call.1} parent=1 // pred_region
      %84 = dma.done [#allocation7], 8192
    $region37: #{tpu_custom_call.1} parent=1 // pred_fallthru
      _
    // Predicated region
    $region38: #{tpu_custom_call.1} parent=1 // pred_check
      _
    $region39: #{tpu_custom_call.1} parent=1 // pred_check_branch
      %86 = sbr.rel (0) target = $region41
    $region40: #{tpu_custom_call.1} parent=1 // pred_region
      %87 = dma.done [#allocation10], 2048
    $region41: #{tpu_custom_call.1} parent=1 // pred_fallthru
      _
    // Predicated region
    $region42: #{tpu_custom_call.1} parent=1 // pred_check
      _
    $region43: #{tpu_custom_call.1} parent=1 // pred_check_branch
      %89 = sbr.rel (0) target = $region45
    $region44: #{tpu_custom_call.1} parent=1 // pred_region
      %90 = dma.done [#allocation10], 512
    $region45: #{tpu_custom_call.1} parent=1 // pred_fallthru
      _
    %v92 = vld [vmem:[#allocation3] sm:$0xff]
    %s93 = sld [smem:[#allocation2]]
    %v94 = vlaneseq
    %v95 = vshrl.u32 %v94, 7
    %v96 = vlaneseq
    %v97 = vand.u32 %v96, 127
    %v98 = vadd.s32 %v97, 128
    %v99 = vmul.u32 %v95, 256
    %v100 = vadd.s32 %v99, %v97
    %v101 = vadd.s32 %v99, %v98
    %s102 = smul.u32 %s93, 100003
    %v103 = vstv %s102
    %v104 = vadd.s32 %v100, %v103
    %v105 = vadd.s32 %v101, %v103
    %v106 = vshra.s32 %v104, 16
    %v107 = vshra.s32 %v105, 16
    %v108 = vand.u32 %v106, 65535
    %v109 = vand.u32 %v107, 65535
    %v110 = vxor.u32 %v104, %v108
    %v111 = vxor.u32 %v105, %v109
    %v112 = vmul.u32 %v110, 73244475
    %v113 = vmul.u32 %v111, 73244475
    %v114 = vshra.s32 %v112, 16
    %v115 = vshra.s32 %v113, 16
    %v116 = vand.u32 %v114, 65535
    %v117 = vand.u32 %v115, 65535
    %v118 = vxor.u32 %v112, %v116
    %v119 = vxor.u32 %v113, %v117
    %v120 = vmul.u32 %v118, 73244475
    %v121 = vmul.u32 %v119, 73244475
    %v122 = vshra.s32 %v120, 29
    %v123 = vshra.s32 %v121, 29
    %v124 = vld [vmem:[#allocation6] sm:$0xff]
    %v125 = vld [vmem:[#allocation6 + $0x8] sm:$0xff]
    %v126 = vld [vmem:[#allocation11] ss:$8 sm:$0x3]
    %s127 = scalar_lea.vmem [#allocation11], 1
    %v128 = vld [vmem:[%s127] ss:$8 sm:$0x3]
    %s129 = scalar_lea.vmem [#allocation11], 2
    %v130 = vld [vmem:[%s129] ss:$8 sm:$0x3]
    %v131 = vpack.c.bf16 %v92, %v92
    %v133 = vlaneseq
    %v134 = vshrl.u32 %v133, 7
    %v135 = vsub.s32 0, %v134
    %v136 = vrot.slane %v126, %v135
    %v137 = vlaneseq
    %v138 = vshrl.u32 %v137, 7
    %v139 = vsub.s32 1, %v138
    %v140 = vrot.slane %v126, %v139
    %v145 = vunpack.c.l.b16 %v124
    %v146 = vunpack.c.h.b16 %v124
    %v147 = vunpack.c.l.b16 %v125
    %v148 = vunpack.c.h.b16 %v125
    %v149 = vpack.c.b16 %v147, %v145
    %v150 = vpack.c.b16 %v148, %v146
    %vm153 = vcmask 130048
    %v155 = vsel %vm153, %v131, 0
    %157 = vmatprep.subr.bf16.mxu0 0
    %158 = vmatpush1.bf16.msra.mxu0 0
    %159 = vmatprep.subr.bf16.mxu0 0
    %160 = vmatpush1.bf16.msra.mxu0 0
    %161 = vmatprep.subr.bf16.mxu0 0
    %162 = vmatpush1.bf16.msra.mxu0 0
    %163 = vmatprep.subr.bf16.mxu0 0
    %164 = vmatpush1.bf16.msra.mxu0 0
    %165 = vmatprep.subr.bf16.mxu0 0
    %166 = vmatpush1.bf16.msra.mxu0 0
    %167 = vmatprep.subr.bf16.mxu0 0
    %168 = vmatpush1.bf16.msra.mxu0 0
    %169 = vmatprep.subr.bf16.mxu0 0
    %170 = vmatpush1.bf16.msra.mxu0 0
    %171 = vmatprep.subr.bf16.mxu0 %v150
    %172 = vmatpush1.bf16.msra.mxu0 %v149
    %173 = vmatprep.subr.bf16.mxu0 0
    %174 = vmatpush2.bf16.msra.mxu0 0
    %175 = vmatprep.subr.bf16.mxu0 0
    %176 = vmatpush2.bf16.msra.mxu0 0
    %177 = vmatprep.subr.bf16.mxu0 0
    %178 = vmatpush2.bf16.msra.mxu0 0
    %179 = vmatprep.subr.bf16.mxu0 0
    %180 = vmatpush2.bf16.msra.mxu0 0
    %181 = vmatprep.subr.bf16.mxu0 0
    %182 = vmatpush2.bf16.msra.mxu0 0
    %183 = vmatprep.subr.bf16.mxu0 0
    %184 = vmatpush2.bf16.msra.mxu0 0
    %185 = vmatprep.subr.bf16.mxu0 0
    %186 = vmatpush2.bf16.msra.mxu0 0
    %187 = vmatprep.subr.bf16.mxu0 0
    %188 = vmatpush2.bf16.msra.mxu0 0
    %189 = vmatprep.mubr.bf16.mxu0 0
    %190 = vmatmul.mubr.bf16.gmra.mxu0 %v155
    %v191 = vpop.f32.mrf.mxu0
    %v192 = vadd.f32 %v136, %v191
    %v193 = vpop.f32.mrf.mxu0
    %v194 = vadd.f32 %v140, %v193
    %v195 = vpop.f32.mrf.mxu0
    %v196 = vpop.f32.mrf.mxu0
    %197 = vdwg.mxu0
    %v198 = vmax.f32 %v192, 0.0
    %v199 = vmax.f32 %v194, 0.0
    %v200 = vrot.slane %v198, 4
    %v201 = vadd.f32 %v198, %v200
    %v202 = vrot.slane %v201, 2
    %v203 = vadd.f32 %v201, %v202
    %v204 = vrot.slane %v203, 1
    %v205 = vadd.f32 %v203, %v204
    %v206 = vrot.slane %v199, 4
    %v207 = vadd.f32 %v199, %v206
    %v208 = vrot.slane %v207, 2
    %v209 = vadd.f32 %v207, %v208
    %v210 = vrot.slane %v209, 1
    %v211 = vadd.f32 %v209, %v210
    %v212 = vrcp.pop 8.0
    %v213 = vmul.f32 %v205, %v212
    %v214 = vmul.f32 %v211, %v212
    %v215 = vsub.f32 %v198, %v213
    %v216 = vsub.f32 %v199, %v214
    %v217 = vmul.f32 %v215, %v215
    %v218 = vmul.f32 %v216, %v216
    %v219 = vrot.slane %v217, 4
    %v220 = vadd.f32 %v217, %v219
    %v221 = vrot.slane %v220, 2
    %v222 = vadd.f32 %v220, %v221
    %v223 = vrot.slane %v222, 1
    %v224 = vadd.f32 %v222, %v223
    %v225 = vrot.slane %v218, 4
    %v226 = vadd.f32 %v218, %v225
    %v227 = vrot.slane %v226, 2
    %v228 = vadd.f32 %v226, %v227
    %v229 = vrot.slane %v228, 1
    %v230 = vadd.f32 %v228, %v229
    %v231 = vmul.f32 %v224, %v212
    %v232 = vmul.f32 %v230, %v212
    %v233 = vadd.f32 %v231, 1e-05
    %v234 = vadd.f32 %v232, 1e-05
    %v235 = vrsqrt.pop %v233
    %v236 = vrsqrt.pop %v234
    %v238 = vlaneseq
    %v239 = vshrl.u32 %v238, 7
    %v240 = vsub.s32 0, %v239
    %v241 = vrot.slane %v128, %v240
    %v242 = vlaneseq
    %v243 = vshrl.u32 %v242, 7
    %v244 = vsub.s32 1, %v243
    %v245 = vrot.slane %v128, %v244
    %v248 = vmul.f32 %v235, %v241
    %v249 = vmul.f32 %v236, %v245
    %v250 = vlaneseq
    %v251 = vshrl.u32 %v250, 7
    %v252 = vsub.s32 0, %v251
    %v253 = vrot.slane %v248, %v252
    %v254 = vlaneseq
    %v255 = vshrl.u32 %v254, 7
    %v256 = vsub.s32 0, %v255
    %v257 = vrot.slane %v249, %v256
    %v258 = vmul.f32 %v215, %v253
    %v259 = vmul.f32 %v216, %v257
    %v261 = vlaneseq
    %v262 = vshrl.u32 %v261, 7
    %v263 = vsub.s32 0, %v262
    %v264 = vrot.slane %v130, %v263
    %v265 = vlaneseq
    %v266 = vshrl.u32 %v265, 7
    %v267 = vsub.s32 1, %v266
    %v268 = vrot.slane %v130, %v267
    %v271 = vadd.f32 %v258, %v264
    %v272 = vadd.f32 %v259, %v268
    %v273 = vand.u32 %v122, 1
    %v274 = vand.u32 %v123, 1
    %vm275 = vcmp.eq.s32.totalorder %v273, 0
    %vm276 = vcmp.eq.s32.totalorder %v274, 0
    %v277 = vsel %vm275, %v271, 0.0
    %v278 = vsel %vm276, %v272, 0.0
    %v279 = vld [vmem:[#allocation8] sm:$0xff]
    %v280 = vld [vmem:[#allocation8 + $0x8] sm:$0xff]
    %v281 = vld [vmem:[#allocation8 + $0x10] sm:$0xff]
    %v282 = vld [vmem:[#allocation8 + $0x18] sm:$0xff]
    %v283 = vld [vmem:[#allocation8 + $0x20] sm:$0xff]
    %v284 = vld [vmem:[#allocation8 + $0x28] sm:$0xff]
    %v285 = vld [vmem:[#allocation8 + $0x30] sm:$0xff]
    %v286 = vld [vmem:[#allocation8 + $0x38] sm:$0xff]
    %v287 = vld [vmem:[#allocation8 + $0x40] sm:$0xff]
    %v288 = vld [vmem:[#allocation8 + $0x48] sm:$0xff]
    %v289 = vld [vmem:[#allocation8 + $0x50] sm:$0xff]
    %v290 = vld [vmem:[#allocation8 + $0x58] sm:$0xff]
    %v291 = vld [vmem:[#allocation8 + $0x60] sm:$0xff]
    %v292 = vld [vmem:[#allocation8 + $0x68] sm:$0xff]
    %v293 = vld [vmem:[#allocation8 + $0x70] sm:$0xff]
    %v294 = vld [vmem:[#allocation8 + $0x78] sm:$0xff]
    %v295 = vld [vmem:[#allocation8 + $0x80] sm:$0xff]
    %v296 = vld [vmem:[#allocation8 + $0x88] sm:$0xff]
    %v297 = vld [vmem:[#allocation8 + $0x90] sm:$0xff]
    %v298 = vld [vmem:[#allocation8 + $0x98] sm:$0xff]
    %v299 = vld [vmem:[#allocation8 + $0xa0] sm:$0xff]
    %v300 = vld [vmem:[#allocation8 + $0xa8] sm:$0xff]
    %v301 = vld [vmem:[#allocation8 + $0xb0] sm:$0xff]
    %v302 = vld [vmem:[#allocation8 + $0xb8] sm:$0xff]
    %v303 = vld [vmem:[#allocation8 + $0xc0] sm:$0xff]
    %v304 = vld [vmem:[#allocation8 + $0xc8] sm:$0xff]
    %v305 = vld [vmem:[#allocation8 + $0xd0] sm:$0xff]
    %v306 = vld [vmem:[#allocation8 + $0xd8] sm:$0xff]
    %v307 = vld [vmem:[#allocation8 + $0xe0] sm:$0xff]
    %v308 = vld [vmem:[#allocation8 + $0xe8] sm:$0xff]
    %v309 = vld [vmem:[#allocation8 + $0xf0] sm:$0xff]
    %v310 = vld [vmem:[#allocation8 + $0xf8] sm:$0xff]
    %s311 = scalar_lea.vmem [#allocation11], 3
    %v312 = vld [vmem:[%s311] ss:$8 sm:$0x3]
    %s313 = scalar_lea.vmem [#allocation11], 4
    %v314 = vld [vmem:[%s313] ss:$8 sm:$0x3]
    %s315 = scalar_lea.vmem [#allocation11], 5
    %v316 = vld [vmem:[%s315] ss:$8 sm:$0x3]
    %v317 = vpack.c.bf16 %v277, %v277
    %v318 = vpack.c.bf16 %v278, %v278
    %v320 = vlaneseq
    %v321 = vshrl.u32 %v320, 7
    %v322 = vsub.s32 0, %v321
    %v323 = vrot.slane %v312, %v322
    %v324 = vlaneseq
    %v325 = vshrl.u32 %v324, 7
    %v326 = vsub.s32 1, %v325
    %v327 = vrot.slane %v312, %v326
    %v362 = vunpack.c.l.b16 %v279
    %v363 = vunpack.c.h.b16 %v279
    %v364 = vunpack.c.l.b16 %v280
    %v365 = vunpack.c.h.b16 %v280
    %v366 = vunpack.c.l.b16 %v281
    %v367 = vunpack.c.h.b16 %v281
    %v368 = vunpack.c.l.b16 %v282
    %v369 = vunpack.c.h.b16 %v282
    %v370 = vunpack.c.l.b16 %v283
    %v371 = vunpack.c.h.b16 %v283
    %v372 = vunpack.c.l.b16 %v284
    %v373 = vunpack.c.h.b16 %v284
    %v374 = vunpack.c.l.b16 %v285
    %v375 = vunpack.c.h.b16 %v285
    %v376 = vunpack.c.l.b16 %v286
    %v377 = vunpack.c.h.b16 %v286
    %v378 = vunpack.c.l.b16 %v287
    %v379 = vunpack.c.h.b16 %v287
    %v380 = vunpack.c.l.b16 %v288
    %v381 = vunpack.c.h.b16 %v288
    %v382 = vunpack.c.l.b16 %v289
    %v383 = vunpack.c.h.b16 %v289
    %v384 = vunpack.c.l.b16 %v290
    %v385 = vunpack.c.h.b16 %v290
    %v386 = vunpack.c.l.b16 %v291
    %v387 = vunpack.c.h.b16 %v291
    %v388 = vunpack.c.l.b16 %v292
    %v389 = vunpack.c.h.b16 %v292
    %v390 = vunpack.c.l.b16 %v293
    %v391 = vunpack.c.h.b16 %v293
    %v392 = vunpack.c.l.b16 %v294
    %v393 = vunpack.c.h.b16 %v294
    %v394 = vunpack.c.l.b16 %v295
    %v395 = vunpack.c.h.b16 %v295
    %v396 = vunpack.c.l.b16 %v296
    %v397 = vunpack.c.h.b16 %v296
    %v398 = vunpack.c.l.b16 %v297
    %v399 = vunpack.c.h.b16 %v297
    %v400 = vunpack.c.l.b16 %v298
    %v401 = vunpack.c.h.b16 %v298
    %v402 = vunpack.c.l.b16 %v299
    %v403 = vunpack.c.h.b16 %v299
    %v404 = vunpack.c.l.b16 %v300
    %v405 = vunpack.c.h.b16 %v300
    %v406 = vunpack.c.l.b16 %v301
    %v407 = vunpack.c.h.b16 %v301
    %v408 = vunpack.c.l.b16 %v302
    %v409 = vunpack.c.h.b16 %v302
    %v410 = vunpack.c.l.b16 %v303
    %v411 = vunpack.c.h.b16 %v303
    %v412 = vunpack.c.l.b16 %v304
    %v413 = vunpack.c.h.b16 %v304
    %v414 = vunpack.c.l.b16 %v305
    %v415 = vunpack.c.h.b16 %v305
    %v416 = vunpack.c.l.b16 %v306
    %v417 = vunpack.c.h.b16 %v306
    %v418 = vunpack.c.l.b16 %v307
    %v419 = vunpack.c.h.b16 %v307
    %v420 = vunpack.c.l.b16 %v308
    %v421 = vunpack.c.h.b16 %v308
    %v422 = vunpack.c.l.b16 %v309
    %v423 = vunpack.c.h.b16 %v309
    %v424 = vunpack.c.l.b16 %v310
    %v425 = vunpack.c.h.b16 %v310
    %v426 = vpack.c.b16 %v364, %v362
    %v427 = vpack.c.b16 %v365, %v363
    %v428 = vpack.c.b16 %v368, %v366
    %v429 = vpack.c.b16 %v369, %v367
    %v430 = vpack.c.b16 %v372, %v370
    %v431 = vpack.c.b16 %v373, %v371
    %v432 = vpack.c.b16 %v376, %v374
    %v433 = vpack.c.b16 %v377, %v375
    %v434 = vpack.c.b16 %v380, %v378
    %v435 = vpack.c.b16 %v381, %v379
    %v436 = vpack.c.b16 %v384, %v382
    %v437 = vpack.c.b16 %v385, %v383
    %v438 = vpack.c.b16 %v388, %v386
    %v439 = vpack.c.b16 %v389, %v387
    %v440 = vpack.c.b16 %v392, %v390
    %v441 = vpack.c.b16 %v393, %v391
    %v442 = vpack.c.b16 %v396, %v394
    %v443 = vpack.c.b16 %v397, %v395
    %v444 = vpack.c.b16 %v400, %v398
    %v445 = vpack.c.b16 %v401, %v399
    %v446 = vpack.c.b16 %v404, %v402
    %v447 = vpack.c.b16 %v405, %v403
    %v448 = vpack.c.b16 %v408, %v406
    %v449 = vpack.c.b16 %v409, %v407
    %v450 = vpack.c.b16 %v412, %v410
    %v451 = vpack.c.b16 %v413, %v411
    %v452 = vpack.c.b16 %v416, %v414
    %v453 = vpack.c.b16 %v417, %v415
    %v454 = vpack.c.b16 %v420, %v418
    %v455 = vpack.c.b16 %v421, %v419
    %v456 = vpack.c.b16 %v424, %v422
    %v457 = vpack.c.b16 %v425, %v423
    %490 = vmatprep.subr.bf16.mxu0 %v441
    %491 = vmatpush1.bf16.msra.mxu0 %v440
    %492 = vmatprep.subr.bf16.mxu0 %v439
    %493 = vmatpush1.bf16.msra.mxu0 %v438
    %494 = vmatprep.subr.bf16.mxu0 %v437
    %495 = vmatpush1.bf16.msra.mxu0 %v436
    %496 = vmatprep.subr.bf16.mxu0 %v435
    %497 = vmatpush1.bf16.msra.mxu0 %v434
    %498 = vmatprep.subr.bf16.mxu0 %v433
    %499 = vmatpush1.bf16.msra.mxu0 %v432
    %500 = vmatprep.subr.bf16.mxu0 %v431
    %501 = vmatpush1.bf16.msra.mxu0 %v430
    %502 = vmatprep.subr.bf16.mxu0 %v429
    %503 = vmatpush1.bf16.msra.mxu0 %v428
    %504 = vmatprep.subr.bf16.mxu0 %v427
    %505 = vmatpush1.bf16.msra.mxu0 %v426
    %506 = vmatprep.subr.bf16.mxu0 %v457
    %507 = vmatpush2.bf16.msra.mxu0 %v456
    %508 = vmatprep.subr.bf16.mxu0 %v455
    %509 = vmatpush2.bf16.msra.mxu0 %v454
    %510 = vmatprep.subr.bf16.mxu0 %v453
    %511 = vmatpush2.bf16.msra.mxu0 %v452
    %512 = vmatprep.subr.bf16.mxu0 %v451
    %513 = vmatpush2.bf16.msra.mxu0 %v450
    %514 = vmatprep.subr.bf16.mxu0 %v449
    %515 = vmatpush2.bf16.msra.mxu0 %v448
    %516 = vmatprep.subr.bf16.mxu0 %v447
    %517 = vmatpush2.bf16.msra.mxu0 %v446
    %518 = vmatprep.subr.bf16.mxu0 %v445
    %519 = vmatpush2.bf16.msra.mxu0 %v444
    %520 = vmatprep.subr.bf16.mxu0 %v443
    %521 = vmatpush2.bf16.msra.mxu0 %v442
    %522 = vmatprep.mubr.bf16.mxu0 %v318
    %523 = vmatmul.mubr.bf16.gmra.mxu0 %v317
    %v524 = vpop.f32.mrf.mxu0
    %v525 = vadd.f32 %v323, %v524
    %v526 = vpop.f32.mrf.mxu0
    %v527 = vadd.f32 %v327, %v526
    %v528 = vpop.f32.mrf.mxu0
    %v529 = vpop.f32.mrf.mxu0
    %530 = vdwg.mxu0
    %v531 = vmax.f32 %v525, 0.0
    %v532 = vmax.f32 %v527, 0.0
    %v533 = vrot.slane %v531, 4
    %v534 = vadd.f32 %v531, %v533
    %v535 = vrot.slane %v534, 2
    %v536 = vadd.f32 %v534, %v535
    %v537 = vrot.slane %v536, 1
    %v538 = vadd.f32 %v536, %v537
    %v539 = vrot.slane %v532, 4
    %v540 = vadd.f32 %v532, %v539
    %v541 = vrot.slane %v540, 2
    %v542 = vadd.f32 %v540, %v541
    %v543 = vrot.slane %v542, 1
    %v544 = vadd.f32 %v542, %v543
    %v545 = vmul.f32 %v538, %v212
    %v546 = vmul.f32 %v544, %v212
    %v547 = vsub.f32 %v531, %v545
    %v548 = vsub.f32 %v532, %v546
    %v549 = vmul.f32 %v547, %v547
    %v550 = vmul.f32 %v548, %v548
    %v551 = vrot.slane %v549, 4
    %v552 = vadd.f32 %v549, %v551
    %v553 = vrot.slane %v552, 2
    %v554 = vadd.f32 %v552, %v553
    %v555 = vrot.slane %v554, 1
    %v556 = vadd.f32 %v554, %v555
    %v557 = vrot.slane %v550, 4
    %v558 = vadd.f32 %v550, %v557
    %v559 = vrot.slane %v558, 2
    %v560 = vadd.f32 %v558, %v559
    %v561 = vrot.slane %v560, 1
    %v562 = vadd.f32 %v560, %v561
    %v563 = vmul.f32 %v556, %v212
    %v564 = vmul.f32 %v562, %v212
    %v565 = vadd.f32 %v563, 1e-05
    %v566 = vadd.f32 %v564, 1e-05
    %v567 = vrsqrt.pop %v565
    %v568 = vrsqrt.pop %v566
    %v570 = vlaneseq
    %v571 = vshrl.u32 %v570, 7
    %v572 = vsub.s32 0, %v571
    %v573 = vrot.slane %v314, %v572
    %v574 = vlaneseq
    %v575 = vshrl.u32 %v574, 7
    %v576 = vsub.s32 1, %v575
    %v577 = vrot.slane %v314, %v576
    %v580 = vmul.f32 %v567, %v573
    %v581 = vmul.f32 %v568, %v577
    %v582 = vlaneseq
    %v583 = vshrl.u32 %v582, 7
    %v584 = vsub.s32 0, %v583
    %v585 = vrot.slane %v580, %v584
    %v586 = vlaneseq
    %v587 = vshrl.u32 %v586, 7
    %v588 = vsub.s32 0, %v587
    %v589 = vrot.slane %v581, %v588
    %v590 = vmul.f32 %v547, %v585
    %v591 = vmul.f32 %v548, %v589
    %v593 = vlaneseq
    %v594 = vshrl.u32 %v593, 7
    %v595 = vsub.s32 0, %v594
    %v596 = vrot.slane %v316, %v595
    %v597 = vlaneseq
    %v598 = vshrl.u32 %v597, 7
    %v599 = vsub.s32 1, %v598
    %v600 = vrot.slane %v316, %v599
    %v603 = vadd.f32 %v590, %v596
    %v604 = vadd.f32 %v591, %v600
    %v605 = vand.u32 %v122, 2
    %v606 = vand.u32 %v123, 2
    %vm607 = vcmp.eq.s32.totalorder %v605, 0
    %vm608 = vcmp.eq.s32.totalorder %v606, 0
    %v609 = vsel %vm607, %v603, 0.0
    %v610 = vsel %vm608, %v604, 0.0
    %s611 = scalar_lea.vmem [#allocation8], 256
    %v612 = vld [vmem:[%s611] sm:$0xff]
    %v613 = vld [vmem:[%s611 + $0x8] sm:$0xff]
    %v614 = vld [vmem:[%s611 + $0x10] sm:$0xff]
    %v615 = vld [vmem:[%s611 + $0x18] sm:$0xff]
    %v616 = vld [vmem:[%s611 + $0x20] sm:$0xff]
    %v617 = vld [vmem:[%s611 + $0x28] sm:$0xff]
    %v618 = vld [vmem:[%s611 + $0x30] sm:$0xff]
    %v619 = vld [vmem:[%s611 + $0x38] sm:$0xff]
    %v620 = vld [vmem:[%s611 + $0x40] sm:$0xff]
    %v621 = vld [vmem:[%s611 + $0x48] sm:$0xff]
    %v622 = vld [vmem:[%s611 + $0x50] sm:$0xff]
    %v623 = vld [vmem:[%s611 + $0x58] sm:$0xff]
    %v624 = vld [vmem:[%s611 + $0x60] sm:$0xff]
    %v625 = vld [vmem:[%s611 + $0x68] sm:$0xff]
    %v626 = vld [vmem:[%s611 + $0x70] sm:$0xff]
    %v627 = vld [vmem:[%s611 + $0x78] sm:$0xff]
    %v628 = vld [vmem:[%s611 + $0x80] sm:$0xff]
    %v629 = vld [vmem:[%s611 + $0x88] sm:$0xff]
    %v630 = vld [vmem:[%s611 + $0x90] sm:$0xff]
    %v631 = vld [vmem:[%s611 + $0x98] sm:$0xff]
    %v632 = vld [vmem:[%s611 + $0xa0] sm:$0xff]
    %v633 = vld [vmem:[%s611 + $0xa8] sm:$0xff]
    %v634 = vld [vmem:[%s611 + $0xb0] sm:$0xff]
    %v635 = vld [vmem:[%s611 + $0xb8] sm:$0xff]
    %v636 = vld [vmem:[%s611 + $0xc0] sm:$0xff]
    %v637 = vld [vmem:[%s611 + $0xc8] sm:$0xff]
    %v638 = vld [vmem:[%s611 + $0xd0] sm:$0xff]
    %v639 = vld [vmem:[%s611 + $0xd8] sm:$0xff]
    %v640 = vld [vmem:[%s611 + $0xe0] sm:$0xff]
    %v641 = vld [vmem:[%s611 + $0xe8] sm:$0xff]
    %v642 = vld [vmem:[%s611 + $0xf0] sm:$0xff]
    %v643 = vld [vmem:[%s611 + $0xf8] sm:$0xff]
    %s644 = scalar_lea.vmem [#allocation11], 6
    %v645 = vld [vmem:[%s644] ss:$8 sm:$0x3]
    %s646 = scalar_lea.vmem [#allocation11], 7
    %v647 = vld [vmem:[%s646] ss:$8 sm:$0x3]
    %s648 = scalar_lea.vmem [#allocation11], 16
    %v649 = vld [vmem:[%s648] ss:$8 sm:$0x3]
    %v650 = vpack.c.bf16 %v609, %v609
    %v651 = vpack.c.bf16 %v610, %v610
    %v653 = vlaneseq
    %v654 = vshrl.u32 %v653, 7
    %v655 = vsub.s32 0, %v654
    %v656 = vrot.slane %v645, %v655
    %v657 = vlaneseq
    %v658 = vshrl.u32 %v657, 7
    %v659 = vsub.s32 1, %v658
    %v660 = vrot.slane %v645, %v659
    %v695 = vunpack.c.l.b16 %v612
    %v696 = vunpack.c.h.b16 %v612
    %v697 = vunpack.c.l.b16 %v613
    %v698 = vunpack.c.h.b16 %v613
    %v699 = vunpack.c.l.b16 %v614
    %v700 = vunpack.c.h.b16 %v614
    %v701 = vunpack.c.l.b16 %v615
    %v702 = vunpack.c.h.b16 %v615
    %v703 = vunpack.c.l.b16 %v616
    %v704 = vunpack.c.h.b16 %v616
    %v705 = vunpack.c.l.b16 %v617
    %v706 = vunpack.c.h.b16 %v617
    %v707 = vunpack.c.l.b16 %v618
    %v708 = vunpack.c.h.b16 %v618
    %v709 = vunpack.c.l.b16 %v619
    %v710 = vunpack.c.h.b16 %v619
    %v711 = vunpack.c.l.b16 %v620
    %v712 = vunpack.c.h.b16 %v620
    %v713 = vunpack.c.l.b16 %v621
    %v714 = vunpack.c.h.b16 %v621
    %v715 = vunpack.c.l.b16 %v622
    %v716 = vunpack.c.h.b16 %v622
    %v717 = vunpack.c.l.b16 %v623
    %v718 = vunpack.c.h.b16 %v623
    %v719 = vunpack.c.l.b16 %v624
    %v720 = vunpack.c.h.b16 %v624
    %v721 = vunpack.c.l.b16 %v625
    %v722 = vunpack.c.h.b16 %v625
    %v723 = vunpack.c.l.b16 %v626
    %v724 = vunpack.c.h.b16 %v626
    %v725 = vunpack.c.l.b16 %v627
    %v726 = vunpack.c.h.b16 %v627
    %v727 = vunpack.c.l.b16 %v628
    %v728 = vunpack.c.h.b16 %v628
    %v729 = vunpack.c.l.b16 %v629
    %v730 = vunpack.c.h.b16 %v629
    %v731 = vunpack.c.l.b16 %v630
    %v732 = vunpack.c.h.b16 %v630
    %v733 = vunpack.c.l.b16 %v631
    %v734 = vunpack.c.h.b16 %v631
    %v735 = vunpack.c.l.b16 %v632
    %v736 = vunpack.c.h.b16 %v632
    %v737 = vunpack.c.l.b16 %v633
    %v738 = vunpack.c.h.b16 %v633
    %v739 = vunpack.c.l.b16 %v634
    %v740 = vunpack.c.h.b16 %v634
    %v741 = vunpack.c.l.b16 %v635
    %v742 = vunpack.c.h.b16 %v635
    %v743 = vunpack.c.l.b16 %v636
    %v744 = vunpack.c.h.b16 %v636
    %v745 = vunpack.c.l.b16 %v637
    %v746 = vunpack.c.h.b16 %v637
    %v747 = vunpack.c.l.b16 %v638
    %v748 = vunpack.c.h.b16 %v638
    %v749 = vunpack.c.l.b16 %v639
    %v750 = vunpack.c.h.b16 %v639
    %v751 = vunpack.c.l.b16 %v640
    %v752 = vunpack.c.h.b16 %v640
    %v753 = vunpack.c.l.b16 %v641
    %v754 = vunpack.c.h.b16 %v641
    %v755 = vunpack.c.l.b16 %v642
    %v756 = vunpack.c.h.b16 %v642
    %v757 = vunpack.c.l.b16 %v643
    %v758 = vunpack.c.h.b16 %v643
    %v759 = vpack.c.b16 %v697, %v695
    %v760 = vpack.c.b16 %v698, %v696
    %v761 = vpack.c.b16 %v701, %v699
    %v762 = vpack.c.b16 %v702, %v700
    %v763 = vpack.c.b16 %v705, %v703
    %v764 = vpack.c.b16 %v706, %v704
    %v765 = vpack.c.b16 %v709, %v707
    %v766 = vpack.c.b16 %v710, %v708
    %v767 = vpack.c.b16 %v713, %v711
    %v768 = vpack.c.b16 %v714, %v712
    %v769 = vpack.c.b16 %v717, %v715
    %v770 = vpack.c.b16 %v718, %v716
    %v771 = vpack.c.b16 %v721, %v719
    %v772 = vpack.c.b16 %v722, %v720
    %v773 = vpack.c.b16 %v725, %v723
    %v774 = vpack.c.b16 %v726, %v724
    %v775 = vpack.c.b16 %v729, %v727
    %v776 = vpack.c.b16 %v730, %v728
    %v777 = vpack.c.b16 %v733, %v731
    %v778 = vpack.c.b16 %v734, %v732
    %v779 = vpack.c.b16 %v737, %v735
    %v780 = vpack.c.b16 %v738, %v736
    %v781 = vpack.c.b16 %v741, %v739
    %v782 = vpack.c.b16 %v742, %v740
    %v783 = vpack.c.b16 %v745, %v743
    %v784 = vpack.c.b16 %v746, %v744
    %v785 = vpack.c.b16 %v749, %v747
    %v786 = vpack.c.b16 %v750, %v748
    %v787 = vpack.c.b16 %v753, %v751
    %v788 = vpack.c.b16 %v754, %v752
    %v789 = vpack.c.b16 %v757, %v755
    %v790 = vpack.c.b16 %v758, %v756
    %823 = vmatprep.subr.bf16.mxu0 %v774
    %824 = vmatpush1.bf16.msra.mxu0 %v773
    %825 = vmatprep.subr.bf16.mxu0 %v772
    %826 = vmatpush1.bf16.msra.mxu0 %v771
    %827 = vmatprep.subr.bf16.mxu0 %v770
    %828 = vmatpush1.bf16.msra.mxu0 %v769
    %829 = vmatprep.subr.bf16.mxu0 %v768
    %830 = vmatpush1.bf16.msra.mxu0 %v767
    %831 = vmatprep.subr.bf16.mxu0 %v766
    %832 = vmatpush1.bf16.msra.mxu0 %v765
    %833 = vmatprep.subr.bf16.mxu0 %v764
    %834 = vmatpush1.bf16.msra.mxu0 %v763
    %835 = vmatprep.subr.bf16.mxu0 %v762
    %836 = vmatpush1.bf16.msra.mxu0 %v761
    %837 = vmatprep.subr.bf16.mxu0 %v760
    %838 = vmatpush1.bf16.msra.mxu0 %v759
    %839 = vmatprep.subr.bf16.mxu0 %v790
    %840 = vmatpush2.bf16.msra.mxu0 %v789
    %841 = vmatprep.subr.bf16.mxu0 %v788
    %842 = vmatpush2.bf16.msra.mxu0 %v787
    %843 = vmatprep.subr.bf16.mxu0 %v786
    %844 = vmatpush2.bf16.msra.mxu0 %v785
    %845 = vmatprep.subr.bf16.mxu0 %v784
    %846 = vmatpush2.bf16.msra.mxu0 %v783
    %847 = vmatprep.subr.bf16.mxu0 %v782
    %848 = vmatpush2.bf16.msra.mxu0 %v781
    %849 = vmatprep.subr.bf16.mxu0 %v780
    %850 = vmatpush2.bf16.msra.mxu0 %v779
    %851 = vmatprep.subr.bf16.mxu0 %v778
    %852 = vmatpush2.bf16.msra.mxu0 %v777
    %853 = vmatprep.subr.bf16.mxu0 %v776
    %854 = vmatpush2.bf16.msra.mxu0 %v775
    %855 = vmatprep.mubr.bf16.mxu0 %v651
    %856 = vmatmul.mubr.bf16.gmra.mxu0 %v650
    %v857 = vpop.f32.mrf.mxu0
    %v858 = vadd.f32 %v656, %v857
    %v859 = vpop.f32.mrf.mxu0
    %v860 = vadd.f32 %v660, %v859
    %v861 = vpop.f32.mrf.mxu0
    %v862 = vpop.f32.mrf.mxu0
    %863 = vdwg.mxu0
    %v864 = vmax.f32 %v858, 0.0
    %v865 = vmax.f32 %v860, 0.0
    %v866 = vrot.slane %v864, 4
    %v867 = vadd.f32 %v864, %v866
    %v868 = vrot.slane %v867, 2
    %v869 = vadd.f32 %v867, %v868
    %v870 = vrot.slane %v869, 1
    %v871 = vadd.f32 %v869, %v870
    %v872 = vrot.slane %v865, 4
    %v873 = vadd.f32 %v865, %v872
    %v874 = vrot.slane %v873, 2
    %v875 = vadd.f32 %v873, %v874
    %v876 = vrot.slane %v875, 1
    %v877 = vadd.f32 %v875, %v876
    %v878 = vmul.f32 %v871, %v212
    %v879 = vmul.f32 %v877, %v212
    %v880 = vsub.f32 %v864, %v878
    %v881 = vsub.f32 %v865, %v879
    %v882 = vmul.f32 %v880, %v880
    %v883 = vmul.f32 %v881, %v881
    %v884 = vrot.slane %v882, 4
    %v885 = vadd.f32 %v882, %v884
    %v886 = vrot.slane %v885, 2
    %v887 = vadd.f32 %v885, %v886
    %v888 = vrot.slane %v887, 1
    %v889 = vadd.f32 %v887, %v888
    %v890 = vrot.slane %v883, 4
    %v891 = vadd.f32 %v883, %v890
    %v892 = vrot.slane %v891, 2
    %v893 = vadd.f32 %v891, %v892
    %v894 = vrot.slane %v893, 1
    %v895 = vadd.f32 %v893, %v894
    %v896 = vmul.f32 %v889, %v212
    %v897 = vmul.f32 %v895, %v212
    %v898 = vadd.f32 %v896, 1e-05
    %v899 = vadd.f32 %v897, 1e-05
    %v900 = vrsqrt.pop %v898
    %v901 = vrsqrt.pop %v899
    %v903 = vlaneseq
    %v904 = vshrl.u32 %v903, 7
    %v905 = vsub.s32 0, %v904
    %v906 = vrot.slane %v647, %v905
    %v907 = vlaneseq
    %v908 = vshrl.u32 %v907, 7
    %v909 = vsub.s32 1, %v908
    %v910 = vrot.slane %v647, %v909
    %v913 = vmul.f32 %v900, %v906
    %v914 = vmul.f32 %v901, %v910
    %v915 = vlaneseq
    %v916 = vshrl.u32 %v915, 7
    %v917 = vsub.s32 0, %v916
    %v918 = vrot.slane %v913, %v917
    %v919 = vlaneseq
    %v920 = vshrl.u32 %v919, 7
    %v921 = vsub.s32 0, %v920
    %v922 = vrot.slane %v914, %v921
    %v923 = vmul.f32 %v880, %v918
    %v924 = vmul.f32 %v881, %v922
    %v926 = vlaneseq
    %v927 = vshrl.u32 %v926, 7
    %v928 = vsub.s32 0, %v927
    %v929 = vrot.slane %v649, %v928
    %v930 = vlaneseq
    %v931 = vshrl.u32 %v930, 7
    %v932 = vsub.s32 1, %v931
    %v933 = vrot.slane %v649, %v932
    %v936 = vadd.f32 %v923, %v929
    %v937 = vadd.f32 %v924, %v933
    %v938 = vand.u32 %v122, 4
    %v939 = vand.u32 %v123, 4
    %vm940 = vcmp.eq.s32.totalorder %v938, 0
    %vm941 = vcmp.eq.s32.totalorder %v939, 0
    %v942 = vsel %vm940, %v936, 0.0
    %v943 = vsel %vm941, %v937, 0.0
    %v944 = vld [vmem:[#allocation11 + $0x11] ss:$0 sm:$0xff]
    %v945 = vpack.c.bf16 %v942, %v942
    %v946 = vpack.c.bf16 %v943, %v943
    %v947 = vld [vmem:[#allocation9] sm:$0xf]
    %v948 = vld [vmem:[#allocation9 + $0x4] sm:$0xf]
    %v949 = vld [vmem:[#allocation9 + $0x8] sm:$0xf]
    %v950 = vld [vmem:[#allocation9 + $0xc] sm:$0xf]
    %v951 = vld [vmem:[#allocation9 + $0x10] sm:$0xf]
    %v952 = vld [vmem:[#allocation9 + $0x14] sm:$0xf]
    %v953 = vld [vmem:[#allocation9 + $0x18] sm:$0xf]
    %v954 = vld [vmem:[#allocation9 + $0x1c] sm:$0xf]
    %v955 = vld [vmem:[#allocation9 + $0x20] sm:$0xf]
    %v956 = vld [vmem:[#allocation9 + $0x24] sm:$0xf]
    %v957 = vld [vmem:[#allocation9 + $0x28] sm:$0xf]
    %v958 = vld [vmem:[#allocation9 + $0x2c] sm:$0xf]
    %v959 = vld [vmem:[#allocation9 + $0x30] sm:$0xf]
    %v960 = vld [vmem:[#allocation9 + $0x34] sm:$0xf]
    %v961 = vld [vmem:[#allocation9 + $0x38] sm:$0xf]
    %v962 = vld [vmem:[#allocation9 + $0x3c] sm:$0xf]
    %v963 = vld [vmem:[#allocation9 + $0x40] sm:$0xf]
    %v964 = vld [vmem:[#allocation9 + $0x44] sm:$0xf]
    %v965 = vld [vmem:[#allocation9 + $0x48] sm:$0xf]
    %v966 = vld [vmem:[#allocation9 + $0x4c] sm:$0xf]
    %v967 = vld [vmem:[#allocation9 + $0x50] sm:$0xf]
    %v968 = vld [vmem:[#allocation9 + $0x54] sm:$0xf]
    %v969 = vld [vmem:[#allocation9 + $0x58] sm:$0xf]
    %v970 = vld [vmem:[#allocation9 + $0x5c] sm:$0xf]
    %v971 = vld [vmem:[#allocation9 + $0x60] sm:$0xf]
    %v972 = vld [vmem:[#allocation9 + $0x64] sm:$0xf]
    %v973 = vld [vmem:[#allocation9 + $0x68] sm:$0xf]
    %v974 = vld [vmem:[#allocation9 + $0x6c] sm:$0xf]
    %v975 = vld [vmem:[#allocation9 + $0x70] sm:$0xf]
    %v976 = vld [vmem:[#allocation9 + $0x74] sm:$0xf]
    %v977 = vld [vmem:[#allocation9 + $0x78] sm:$0xf]
    %v978 = vld [vmem:[#allocation9 + $0x7c] sm:$0xf]
    %v1011 = vunpack.c.l.b16 %v947
    %v1012 = vunpack.c.l.b16 %v948
    %v1013 = vunpack.c.l.b16 %v949
    %v1014 = vunpack.c.l.b16 %v950
    %v1015 = vunpack.c.l.b16 %v951
    %v1016 = vunpack.c.l.b16 %v952
    %v1017 = vunpack.c.l.b16 %v953
    %v1018 = vunpack.c.l.b16 %v954
    %v1019 = vunpack.c.l.b16 %v955
    %v1020 = vunpack.c.l.b16 %v956
    %v1021 = vunpack.c.l.b16 %v957
    %v1022 = vunpack.c.l.b16 %v958
    %v1023 = vunpack.c.l.b16 %v959
    %v1024 = vunpack.c.l.b16 %v960
    %v1025 = vunpack.c.l.b16 %v961
    %v1026 = vunpack.c.l.b16 %v962
    %v1027 = vunpack.c.l.b16 %v963
    %v1028 = vunpack.c.l.b16 %v964
    %v1029 = vunpack.c.l.b16 %v965
    %v1030 = vunpack.c.l.b16 %v966
    %v1031 = vunpack.c.l.b16 %v967
    %v1032 = vunpack.c.l.b16 %v968
    %v1033 = vunpack.c.l.b16 %v969
    %v1034 = vunpack.c.l.b16 %v970
    %v1035 = vunpack.c.l.b16 %v971
    %v1036 = vunpack.c.l.b16 %v972
    %v1037 = vunpack.c.l.b16 %v973
    %v1038 = vunpack.c.l.b16 %v974
    %v1039 = vunpack.c.l.b16 %v975
    %v1040 = vunpack.c.l.b16 %v976
    %v1041 = vunpack.c.l.b16 %v977
    %v1042 = vunpack.c.l.b16 %v978
    %v1043 = vpack.c.b16 %v1012, %v1011
    %v1044 = vpack.c.b16 %v1014, %v1013
    %v1045 = vpack.c.b16 %v1016, %v1015
    %v1046 = vpack.c.b16 %v1018, %v1017
    %v1047 = vpack.c.b16 %v1020, %v1019
    %v1048 = vpack.c.b16 %v1022, %v1021
    %v1049 = vpack.c.b16 %v1024, %v1023
    %v1050 = vpack.c.b16 %v1026, %v1025
    %v1051 = vpack.c.b16 %v1028, %v1027
    %v1052 = vpack.c.b16 %v1030, %v1029
    %v1053 = vpack.c.b16 %v1032, %v1031
    %v1054 = vpack.c.b16 %v1034, %v1033
    %v1055 = vpack.c.b16 %v1036, %v1035
    %v1056 = vpack.c.b16 %v1038, %v1037
    %v1057 = vpack.c.b16 %v1040, %v1039
    %v1058 = vpack.c.b16 %v1042, %v1041
    %1075 = vmatprep.subr.bf16.mxu0 0
    %1076 = vmatpush1.bf16.msra.mxu0 %v1050
    %1077 = vmatprep.subr.bf16.mxu0 0
    %1078 = vmatpush1.bf16.msra.mxu0 %v1049
    %1079 = vmatprep.subr.bf16.mxu0 0
    %1080 = vmatpush1.bf16.msra.mxu0 %v1048
    %1081 = vmatprep.subr.bf16.mxu0 0
    %1082 = vmatpush1.bf16.msra.mxu0 %v1047
    %1083 = vmatprep.subr.bf16.mxu0 0
    %1084 = vmatpush1.bf16.msra.mxu0 %v1046
    %1085 = vmatprep.subr.bf16.mxu0 0
    %1086 = vmatpush1.bf16.msra.mxu0 %v1045
    %1087 = vmatprep.subr.bf16.mxu0 0
    %1088 = vmatpush1.bf16.msra.mxu0 %v1044
    %1089 = vmatprep.subr.bf16.mxu0 0
    %1090 = vmatpush1.bf16.msra.mxu0 %v1043
    %1091 = vmatprep.subr.bf16.mxu0 0
    %1092 = vmatpush2.bf16.msra.mxu0 %v1058
    %1093 = vmatprep.subr.bf16.mxu0 0
    %1094 = vmatpush2.bf16.msra.mxu0 %v1057
    %1095 = vmatprep.subr.bf16.mxu0 0
    %1096 = vmatpush2.bf16.msra.mxu0 %v1056
    %1097 = vmatprep.subr.bf16.mxu0 0
    %1098 = vmatpush2.bf16.msra.mxu0 %v1055
    %1099 = vmatprep.subr.bf16.mxu0 0
    %1100 = vmatpush2.bf16.msra.mxu0 %v1054
    %1101 = vmatprep.subr.bf16.mxu0 0
    %1102 = vmatpush2.bf16.msra.mxu0 %v1053
    %1103 = vmatprep.subr.bf16.mxu0 0
    %1104 = vmatpush2.bf16.msra.mxu0 %v1052
    %1105 = vmatprep.subr.bf16.mxu0 0
    %1106 = vmatpush2.bf16.msra.mxu0 %v1051
    %1107 = vmatprep.mubr.bf16.mxu0 %v946
    %1108 = vmatmul.mubr.bf16.gmra.mxu0 %v945
    %v1109 = vpop.f32.mrf.mxu0
    %v1110 = vadd.f32 %v944, %v1109
    %v1111 = vpop.f32.mrf.mxu0
    %v1112 = vpop.f32.mrf.mxu0
    %v1113 = vpop.f32.mrf.mxu0
    %1114 = vdwg.mxu0
    %1115 = vmax.xlane.f32.xlu0 %v1110
    %v1116 = vpop.xlane.xlu0 %1115
    %v1117 = vsub.f32 %v1110, %v1116
    %v1118 = vmul.f32 %v1117, 1.442695
    %v1119 = vpow.pop %v1118
    %1120 = vadd.xlane.f32.xlu0 %v1119
    %v1121 = vpop.xlane.xlu0 %1120
    %v1122 = vrcp.pop %v1121
    %v1123 = vmul.f32 %v1119, %v1122
    %1124 = vst [vmem:[#allocation12] sm:$0xff] %v1123
    // Predicated region
    $region46: #{tpu_custom_call.1} parent=1 // pred_check
      _
    $region47: #{tpu_custom_call.1} parent=1 // pred_check_branch
      %1126 = sbr.rel (0) target = $region49
    $region48: #{tpu_custom_call.1} parent=1 // pred_region
      %s1128 = ssub.s32 128, 128
      %1129 = vsyncadd [#allocation5], %s1128
      %s1131 = sshll.u32 [#allocation12], 4
      %s1132 = int_to_ptr.vmem [resolvable:$true] %s1131
      %1134 = dma.vmem_to_hbm [thread:$0]  %s1132, 128, %s6, [#allocation5]
    $region49: #{tpu_custom_call.1} parent=1 // pred_fallthru
      _
    // Predicated region
    $region50: #{tpu_custom_call.1} parent=1 // pred_check
      _
    $region51: #{tpu_custom_call.1} parent=1 // pred_check_branch
      %1136 = sbr.rel (0) target = $region53
    $region52: #{tpu_custom_call.1} parent=1 // pred_region
      %1137 = dma.done [#allocation5], 128
    $region53: #{tpu_custom_call.1} parent=1 // pred_fallthru
      _
    %1138 = vsyncpa [#allocation4], 1
    %1139 = vsyncpa [#allocation7], 1
    %1140 = vsyncpa [#allocation10], 1
    %1141 = vsyncpa [#allocation5], 1

</llo_original>
